<compile_context>
chip_gen: v7x
topology: tpu7x:2x2x1
jax: 0.10.0
libtpu: 0.0.40
codegen_flags: <defaults>
</compile_context>

<pallas_src>
import functools

import jax
import jax.numpy as jnp
from jax.experimental import pallas as pl
from jax.experimental.pallas import tpu as pltpu

HIDDEN = 256
LANE = 128     # vreg lane width
SUBLANE = 8    # vreg sublane count (f32)


def _round_up(x, m):
    return ((x + m - 1) // m) * m


def _actor_kernel(s_ref, w1_ref, b1_ref, w2_ref, b2_ref, w3_ref, b3_ref,
                  o_ref, *, max_action):
    # state tile: (TM, state_dim); weights possibly bf16, biases f32,
    # all matmul accumulation in f32 on the MXU.
    x = s_ref[...]

    h1 = jnp.dot(x, w1_ref[...], preferred_element_type=jnp.float32)
    h1 = jnp.maximum(h1 + b1_ref[...], 0.0)                       # relu (VPU, f32)

    h2 = jnp.dot(h1.astype(w2_ref.dtype), w2_ref[...],
                 preferred_element_type=jnp.float32)
    h2 = jnp.maximum(h2 + b2_ref[...], 0.0)                       # relu (VPU, f32)

    h3 = jnp.dot(h2.astype(w3_ref.dtype), w3_ref[...],
                 preferred_element_type=jnp.float32)
    a = jnp.tanh(h3 + b3_ref[...]) * max_action                   # tanh (EUP, f32)

    o_ref[...] = a.astype(o_ref.dtype)


@functools.partial(jax.jit, static_argnames=("max_action", "tm", "use_bf16"))
def actor_forward(state, params, max_action, *, tm=256, use_bf16=True):
    """state: (B, state_dim) f32. params: dict of w1,b1,w2,b2,w3,b3 (f32).

    Returns (B, action_dim) f32 actions in [-max_action, max_action].
    """
    B, state_dim = state.shape
    action_dim = params["w3"].shape[1]

    # --- Lane-dense output head: pad action_dim -> multiple of 128. ---------
    out_pad = _round_up(action_dim, LANE)
    w3 = params["w3"]
    b3 = params["b3"]
    if out_pad != action_dim:
        w3 = jnp.pad(w3, ((0, 0), (0, out_pad - action_dim)))
        b3 = jnp.pad(b3, ((0, 0), (0, out_pad - action_dim)))

    # --- Batch tiling: tile TM (multiple of 8), pad B to a tile multiple. ---
    tm_eff = _round_up(min(tm, _round_up(B, SUBLANE)), SUBLANE)
    b_pad = _round_up(B, tm_eff)
    grid = (b_pad // tm_eff,)

    # --- Optional bf16 MXU operands (f32 accumulate stays in the kernel). ---
    if use_bf16:
        x = state.astype(jnp.bfloat16)
        w1 = params["w1"].astype(jnp.bfloat16)
        w2 = params["w2"].astype(jnp.bfloat16)
        w3 = w3.astype(jnp.bfloat16)
    else:
        x = state
        w1 = params["w1"]
        w2 = params["w2"]
    b1 = params["b1"]
    b2 = params["b2"]

    if b_pad != B:
        x = jnp.pad(x, ((0, b_pad - B), (0, 0)))

    # --- BlockSpecs: tiled state/out, VMEM-resident weights (constant map). -
    tile_map = lambda i: (i, 0)
    const_map = lambda i: (0, 0)
    in_specs = [
        pl.BlockSpec((tm_eff, state_dim), tile_map),
        pl.BlockSpec((state_dim, HIDDEN), const_map),
        pl.BlockSpec((1, HIDDEN), const_map),
        pl.BlockSpec((HIDDEN, HIDDEN), const_map),
        pl.BlockSpec((1, HIDDEN), const_map),
        pl.BlockSpec((HIDDEN, out_pad), const_map),
        pl.BlockSpec((1, out_pad), const_map),
    ]
    out_spec = pl.BlockSpec((tm_eff, out_pad), tile_map)

    # --- Cost estimate + VMEM budget sized from the actual tile footprint. --
    act_bytes = 2 if use_bf16 else 4
    weight_bytes = ((state_dim * HIDDEN + HIDDEN * HIDDEN + HIDDEN * out_pad) * act_bytes
                    + (HIDDEN + HIDDEN + out_pad) * 4)
    bytes_accessed = (b_pad * state_dim * act_bytes   # state in
                      + weight_bytes                  # weights/biases in
                      + b_pad * out_pad * 4)          # actions out
    flops = 2 * b_pad * (state_dim + HIDDEN + out_pad) * HIDDEN
    cost = pl.CostEstimate(flops=int(flops),
                           transcendentals=int(b_pad * out_pad),
                           bytes_accessed=int(bytes_accessed))

    vmem_est = (2 * weight_bytes                        # resident weights (+slack)
                + 2 * tm_eff * state_dim * act_bytes    # double-buffered state tile
                + 2 * tm_eff * out_pad * 4              # double-buffered out tile
                + 4 * tm_eff * HIDDEN * 4)              # h1/h2 intermediates + slack
    vmem_limit = int(min(max(2 * vmem_est, 4 << 20), 32 << 20))

    kernel = functools.partial(_actor_kernel, max_action=float(max_action))

    out = pl.pallas_call(
        kernel,
        out_shape=jax.ShapeDtypeStruct((b_pad, out_pad), jnp.float32),
        grid=grid,
        in_specs=in_specs,
        out_specs=out_spec,
        compiler_params=pltpu.CompilerParams(
            dimension_semantics=("parallel",),     # megacore sharding on v7x
            vmem_limit_bytes=vmem_limit,
        ),
        cost_estimate=cost,
    )(x, w1, b1, w2, b2, w3, b3)

    return out[:B, :action_dim]


def init_actor_params(key, state_dim, action_dim):
    """Deterministic init mimicking nn.Linear's U(-1/sqrt(fan_in), 1/sqrt(fan_in))."""
    def linear(key, fan_in, fan_out):
        kw, kb = jax.random.split(key)
        bound = 1.0 / jnp.sqrt(fan_in)
        w = jax.random.uniform(kw, (fan_in, fan_out), jnp.float32, -bound, bound)
        b = jax.random.uniform(kb, (1, fan_out), jnp.float32, -bound, bound)
        return w, b

    k1, k2, k3 = jax.random.split(key, 3)
    w1, b1 = linear(k1, state_dim, HIDDEN)
    w2, b2 = linear(k2, HIDDEN, HIDDEN)
    w3, b3 = linear(k3, HIDDEN, action_dim)
    return dict(w1=w1, b1=b1, w2=w2, b2=b2, w3=w3, b3=b3)


def actor_forward_ref(state, params, max_action):
    """Pure-JAX reference for verification (f32 throughout)."""
    x = jnp.maximum(state @ params["w1"] + params["b1"], 0.0)
    x = jnp.maximum(x @ params["w2"] + params["b2"], 0.0)
    return jnp.tanh(x @ params["w3"] + params["b3"]) * max_action


if __name__ == "__main__":
    key = jax.random.PRNGKey(0)
    k_param, k_state, k_big = jax.random.split(key, 3)

    batch = 2
    state_dim = 16
    action_dim = 4
    max_action = 2.0

    params = init_actor_params(k_param, state_dim, action_dim)
    state = jax.random.normal(k_state, (batch, state_dim), jnp.float32)
    ref = actor_forward_ref(state, params, max_action)

    # Exact-precision path (f32 MXU operands) — tight tolerance.
    out_f32 = jax.block_until_ready(
        actor_forward(state, params, max_action, use_bf16=False))
    assert out_f32.shape == (batch, action_dim)
    assert jnp.allclose(out_f32, ref, atol=1e-5, rtol=1e-5), "f32 path mismatch"

    # bf16-operand fast path (v6e/v7x MXU-native) — looser tolerance.
    out_bf16 = jax.block_until_ready(
        actor_forward(state, params, max_action, use_bf16=True))
    assert out_bf16.shape == (batch, action_dim)
    assert jnp.allclose(out_bf16, ref, atol=5e-2, rtol=5e-2), "bf16 path mismatch"

    # Multi-tile grid + batch padding path (B not a multiple of the tile).
    big_B = 40
    big_state = jax.random.normal(k_big, (big_B, state_dim), jnp.float32)
    ref_big = actor_forward_ref(big_state, params, max_action)
    out_big = jax.block_until_ready(
        actor_forward(big_state, params, max_action, tm=16, use_bf16=False))
    assert out_big.shape == (big_B, action_dim)
    assert jnp.allclose(out_big, ref_big, atol=1e-5, rtol=1e-5), "tiled path mismatch"

    print("KERNEL_OK")
</pallas_src>

<mosaic_0001>
module attributes {stable_mosaic.version = 11 : i64} {
  func.func @_actor_kernel(%arg0: i32, %arg1: memref<8x16xf32, #tpu.memory_space<vmem>>, %arg2: memref<16x256xf32, #tpu.memory_space<vmem>>, %arg3: memref<1x256xf32, #tpu.memory_space<vmem>>, %arg4: memref<256x256xf32, #tpu.memory_space<vmem>>, %arg5: memref<1x256xf32, #tpu.memory_space<vmem>>, %arg6: memref<256x128xf32, #tpu.memory_space<vmem>>, %arg7: memref<1x128xf32, #tpu.memory_space<vmem>>, %arg8: memref<8x128xf32, #tpu.memory_space<vmem>>) attributes {dimension_semantics = [#tpu.dimension_semantics<parallel>], iteration_bounds = array<i64: 1>, scalar_prefetch = 0 : i64, scratch_operands = 0 : i64, tpu.core_type = #tpu.core_type<tc>, window_params = [{transform_indices = @transform_0, window_bounds = array<i64: 8, 16>}, {pipeline_mode = #tpu.pipeline_mode<synchronous>, transform_indices = @transform_1, window_bounds = array<i64: 16, 256>}, {pipeline_mode = #tpu.pipeline_mode<synchronous>, transform_indices = @transform_2, window_bounds = array<i64: 1, 256>}, {pipeline_mode = #tpu.pipeline_mode<synchronous>, transform_indices = @transform_3, window_bounds = array<i64: 256, 256>}, {pipeline_mode = #tpu.pipeline_mode<synchronous>, transform_indices = @transform_4, window_bounds = array<i64: 1, 256>}, {pipeline_mode = #tpu.pipeline_mode<synchronous>, transform_indices = @transform_5, window_bounds = array<i64: 256, 128>}, {pipeline_mode = #tpu.pipeline_mode<synchronous>, transform_indices = @transform_6, window_bounds = array<i64: 1, 128>}, {transform_indices = @transform_7, window_bounds = array<i64: 8, 128>}]} {
    %c0 = arith.constant 0 : index
    %c0_0 = arith.constant 0 : index
    %0 = vector.load %arg1[%c0, %c0_0] : memref<8x16xf32, #tpu.memory_space<vmem>>, vector<8x16xf32>
    %c0_1 = arith.constant 0 : index
    %c0_2 = arith.constant 0 : index
    %1 = vector.load %arg2[%c0_1, %c0_2] : memref<16x256xf32, #tpu.memory_space<vmem>>, vector<16x256xf32>
    %cst = arith.constant dense<0.000000e+00> : vector<8x256xf32>
    %2 = tpu.matmul %0, %1, %cst {dimension_numbers = #tpu.dot_dimension_numbers<[1], [0], [0], [1], [0, 0, 1, 1], [], []>} : vector<8x16xf32>, vector<16x256xf32>, vector<8x256xf32> -> vector<8x256xf32>
    %c0_3 = arith.constant 0 : index
    %c0_4 = arith.constant 0 : index
    %3 = vector.load %arg3[%c0_3, %c0_4] : memref<1x256xf32, #tpu.memory_space<vmem>>, vector<1x256xf32>
    %4 = vector.broadcast %3 : vector<1x256xf32> to vector<8x256xf32>
    %5 = arith.addf %2, %4 : vector<8x256xf32>
    %cst_5 = arith.constant 0.000000e+00 : f32
    %6 = vector.broadcast %cst_5 : f32 to vector<8x256xf32>
    %7 = arith.maximumf %5, %6 : vector<8x256xf32>
    %c0_6 = arith.constant 0 : index
    %c0_7 = arith.constant 0 : index
    %8 = vector.load %arg4[%c0_6, %c0_7] : memref<256x256xf32, #tpu.memory_space<vmem>>, vector<256x256xf32>
    %cst_8 = arith.constant dense<0.000000e+00> : vector<8x256xf32>
    %9 = tpu.matmul %7, %8, %cst_8 {dimension_numbers = #tpu.dot_dimension_numbers<[1], [0], [0], [1], [0, 0, 1, 1], [], []>} : vector<8x256xf32>, vector<256x256xf32>, vector<8x256xf32> -> vector<8x256xf32>
    %c0_9 = arith.constant 0 : index
    %c0_10 = arith.constant 0 : index
    %10 = vector.load %arg5[%c0_9, %c0_10] : memref<1x256xf32, #tpu.memory_space<vmem>>, vector<1x256xf32>
    %11 = vector.broadcast %10 : vector<1x256xf32> to vector<8x256xf32>
    %12 = arith.addf %9, %11 : vector<8x256xf32>
    %cst_11 = arith.constant 0.000000e+00 : f32
    %13 = vector.broadcast %cst_11 : f32 to vector<8x256xf32>
    %14 = arith.maximumf %12, %13 : vector<8x256xf32>
    %c0_12 = arith.constant 0 : index
    %c0_13 = arith.constant 0 : index
    %15 = vector.load %arg6[%c0_12, %c0_13] : memref<256x128xf32, #tpu.memory_space<vmem>>, vector<256x128xf32>
    %cst_14 = arith.constant dense<0.000000e+00> : vector<8x128xf32>
    %16 = tpu.matmul %14, %15, %cst_14 {dimension_numbers = #tpu.dot_dimension_numbers<[1], [0], [0], [1], [0, 0, 1, 1], [], []>} : vector<8x256xf32>, vector<256x128xf32>, vector<8x128xf32> -> vector<8x128xf32>
    %c0_15 = arith.constant 0 : index
    %c0_16 = arith.constant 0 : index
    %17 = vector.load %arg7[%c0_15, %c0_16] : memref<1x128xf32, #tpu.memory_space<vmem>>, vector<1x128xf32>
    %18 = vector.broadcast %17 : vector<1x128xf32> to vector<8x128xf32>
    %19 = arith.addf %16, %18 : vector<8x128xf32>
    %20 = math.tanh %19 : vector<8x128xf32>
    %cst_17 = arith.constant 2.000000e+00 : f32
    %21 = vector.broadcast %cst_17 : f32 to vector<8x128xf32>
    %22 = arith.mulf %20, %21 : vector<8x128xf32>
    %c0_18 = arith.constant 0 : index
    %c0_19 = arith.constant 0 : index
    %23 = vector.load %arg8[%c0_18, %c0_19] : memref<8x128xf32, #tpu.memory_space<vmem>>, vector<8x128xf32>
    tpu.vector_store %arg8[%c0_18, %c0_19], %22 {strides = array<i32>} : memref<8x128xf32, #tpu.memory_space<vmem>>, vector<8x128xf32>,
    return
  }
  func.func @transform_0(%arg0: i32) -> (i32, i32) {
    %c0_i32 = arith.constant 0 : i32
    %c0_i32_0 = arith.constant 0 : i32
    return %arg0, %c0_i32 : i32, i32
  }
  func.func @transform_1(%arg0: i32) -> (i32, i32) {
    %c0_i32 = arith.constant 0 : i32
    %c0_i32_0 = arith.constant 0 : i32
    %c0_i32_1 = arith.constant 0 : i32
    return %c0_i32, %c0_i32_0 : i32, i32
  }
  func.func @transform_2(%arg0: i32) -> (i32, i32) {
    %c0_i32 = arith.constant 0 : i32
    %c0_i32_0 = arith.constant 0 : i32
    %c0_i32_1 = arith.constant 0 : i32
    return %c0_i32, %c0_i32_0 : i32, i32
  }
  func.func @transform_3(%arg0: i32) -> (i32, i32) {
    %c0_i32 = arith.constant 0 : i32
    %c0_i32_0 = arith.constant 0 : i32
    %c0_i32_1 = arith.constant 0 : i32
    return %c0_i32, %c0_i32_0 : i32, i32
  }
  func.func @transform_4(%arg0: i32) -> (i32, i32) {
    %c0_i32 = arith.constant 0 : i32
    %c0_i32_0 = arith.constant 0 : i32
    %c0_i32_1 = arith.constant 0 : i32
    return %c0_i32, %c0_i32_0 : i32, i32
  }
  func.func @transform_5(%arg0: i32) -> (i32, i32) {
    %c0_i32 = arith.constant 0 : i32
    %c0_i32_0 = arith.constant 0 : i32
    %c0_i32_1 = arith.constant 0 : i32
    return %c0_i32, %c0_i32_0 : i32, i32
  }
  func.func @transform_6(%arg0: i32) -> (i32, i32) {
    %c0_i32 = arith.constant 0 : i32
    %c0_i32_0 = arith.constant 0 : i32
    %c0_i32_1 = arith.constant 0 : i32
    return %c0_i32, %c0_i32_0 : i32, i32
  }
  func.func @transform_7(%arg0: i32) -> (i32, i32) {
    %c0_i32 = arith.constant 0 : i32
    %c0_i32_0 = arith.constant 0 : i32
    return %arg0, %c0_i32 : i32, i32
  }
}

</mosaic_0001>

<llo_original>
// kernel: actor_forward.1
$region0: #{actor_forward.1}
  #allocation0 [shape = 'u32[]', space=smem, size = 0x4, offset = 0x4, fixed_abs, tag = 'smem constant byte address 0x4 - core index']
  #allocation1 [shape = 'u32[144,128]{1,0:T(1,128)}', space=vmem, size = 0x12000, scoped, tag = 'internal scratch']
  %s0 = inlined_call_operand.vmem [shape: f32[8,16], index: 0, kind: input, shape index: {}]
  %s1 = inlined_call_operand.vmem [shape: f32[16,256], index: 1, kind: input, shape index: {}]
  %s2 = inlined_call_operand.vmem [shape: f32[1,256], index: 2, kind: input, shape index: {}]
  %s3 = inlined_call_operand.vmem [shape: f32[256,256], index: 3, kind: input, shape index: {}]
  %s4 = inlined_call_operand.vmem [shape: f32[1,256], index: 4, kind: input, shape index: {}]
  %s5 = inlined_call_operand.vmem [shape: f32[256,128], index: 5, kind: input, shape index: {}]
  %s6 = inlined_call_operand.vmem [shape: f32[1,128], index: 6, kind: input, shape index: {}]
  %s7 = inlined_call_operand.vmem [shape: f32[8,128], index: 7, kind: output, shape index: {}]
  %s8 = sld [smem:[#allocation0]]
  $region38: #{actor_forward.1} parent=0
    _
  %s10 = ssub.s32 1, %s8
  %s11 = scalar_select 0, %s10, %s8
  // Predicated region
  $region2: #{actor_forward.1} parent=0 // pred_check
    _
  $region3: #{actor_forward.1} parent=0 // pred_check_branch
    %13 = sbr.rel (0) target = $region5
  $region4: #{actor_forward.1} parent=0 // pred_region
    _
  $region5: #{actor_forward.1} parent=0 // pred_fallthru
    _
  // Predicated region
  $region6: #{actor_forward.1} parent=0 // pred_check
    _
  $region7: #{actor_forward.1} parent=0 // pred_check_branch
    %15 = sbr.rel (0) target = $region9
  $region8: #{actor_forward.1} parent=0 // pred_region
    _
  $region9: #{actor_forward.1} parent=0 // pred_fallthru
    _
  // Predicated region
  $region10: #{actor_forward.1} parent=0 // pred_check
    _
  $region11: #{actor_forward.1} parent=0 // pred_check_branch
    %17 = sbr.rel (0) target = $region13
  $region12: #{actor_forward.1} parent=0 // pred_region
    _
  $region13: #{actor_forward.1} parent=0 // pred_fallthru
    _
  // Predicated region
  $region14: #{actor_forward.1} parent=0 // pred_check
    _
  $region15: #{actor_forward.1} parent=0 // pred_check_branch
    %19 = sbr.rel (0) target = $region17
  $region16: #{actor_forward.1} parent=0 // pred_region
    _
  $region17: #{actor_forward.1} parent=0 // pred_fallthru
    _
  // Predicated region
  $region18: #{actor_forward.1} parent=0 // pred_check
    _
  $region19: #{actor_forward.1} parent=0 // pred_check_branch
    %21 = sbr.rel (0) target = $region21
  $region20: #{actor_forward.1} parent=0 // pred_region
    _
  $region21: #{actor_forward.1} parent=0 // pred_fallthru
    _
  // Predicated region
  $region22: #{actor_forward.1} parent=0 // pred_check
    _
  $region23: #{actor_forward.1} parent=0 // pred_check_branch
    %23 = sbr.rel (0) target = $region25
  $region24: #{actor_forward.1} parent=0 // pred_region
    _
  $region25: #{actor_forward.1} parent=0 // pred_fallthru
    _
  // Predicated region
  $region26: #{actor_forward.1} parent=0 // pred_check
    _
  $region27: #{actor_forward.1} parent=0 // pred_check_branch
    %25 = sbr.rel (0) target = $region29
  $region28: #{actor_forward.1} parent=0 // pred_region
    _
  $region29: #{actor_forward.1} parent=0 // pred_fallthru
    _
  %v26 = vld [vmem:[%s0] sm:$0xff]
  %v27 = vld [vmem:[%s1] sm:$0xff]
  %v28 = vld [vmem:[%s1 + $0x8] sm:$0xff]
  %v29 = vld [vmem:[%s1 + $0x10] sm:$0xff]
  %v30 = vld [vmem:[%s1 + $0x18] sm:$0xff]
  %v31 = vld [vmem:[%s2] sm:$0x3]
  %v33 = vlaneseq
  %v34 = vshrl.u32 %v33, 7
  %v35 = vsub.s32 0, %v34
  %v36 = vrot.slane %v31, %v35
  %v37 = vlaneseq
  %v38 = vshrl.u32 %v37, 7
  %v39 = vsub.s32 1, %v38
  %v40 = vrot.slane %v31, %v39
  %vm43 = vcmask 130048
  %v45 = vsel %vm43, %v26, 0
  %47 = vmatprep.subr.mxu0 %v28
  %48 = vmatpush1.msra.mxu0 %v27
  %49 = vmatprep.subr.mxu0 %v30
  %50 = vmatpush1.msra.mxu0 %v29
  %51 = vmatprep.subr.mxu0 0.0
  %52 = vmatpush1.msra.mxu0 0.0
  %53 = vmatprep.subr.mxu0 0.0
  %54 = vmatpush1.msra.mxu0 0.0
  %55 = vmatprep.subr.mxu0 0.0
  %56 = vmatpush1.msra.mxu0 0.0
  %57 = vmatprep.subr.mxu0 0.0
  %58 = vmatpush1.msra.mxu0 0.0
  %59 = vmatprep.subr.mxu0 0.0
  %60 = vmatpush1.msra.mxu0 0.0
  %61 = vmatprep.subr.mxu0 0.0
  %62 = vmatpush1.msra.mxu0 0.0
  %63 = vmatprep.subr.mxu0 0.0
  %64 = vmatpush1.msra.mxu0 0.0
  %65 = vmatprep.subr.mxu0 0.0
  %66 = vmatpush1.msra.mxu0 0.0
  %67 = vmatprep.subr.mxu0 0.0
  %68 = vmatpush1.msra.mxu0 0.0
  %69 = vmatprep.subr.mxu0 0.0
  %70 = vmatpush1.msra.mxu0 0.0
  %71 = vmatprep.subr.mxu0 0.0
  %72 = vmatpush1.msra.mxu0 0.0
  %73 = vmatprep.subr.mxu0 0.0
  %74 = vmatpush1.msra.mxu0 0.0
  %75 = vmatprep.subr.mxu0 0.0
  %76 = vmatpush1.msra.mxu0 0.0
  %77 = vmatprep.subr.mxu0 0.0
  %78 = vmatpush1.msra.mxu0 0.0
  %79 = vmatprep.subr.mxu0 0.0
  %80 = vmatpush1.msra.mxu0 0.0
  %81 = vmatprep.subr.mxu0 0.0
  %82 = vmatpush1.msra.mxu0 0.0
  %83 = vmatprep.subr.mxu0 0.0
  %84 = vmatpush1.msra.mxu0 0.0
  %85 = vmatprep.subr.mxu0 0.0
  %86 = vmatpush1.msra.mxu0 0.0
  %87 = vmatprep.subr.mxu0 0.0
  %88 = vmatpush1.msra.mxu0 0.0
  %89 = vmatprep.subr.mxu0 0.0
  %90 = vmatpush1.msra.mxu0 0.0
  %91 = vmatprep.subr.mxu0 0.0
  %92 = vmatpush1.msra.mxu0 0.0
  %93 = vmatprep.subr.mxu0 0.0
  %94 = vmatpush1.msra.mxu0 0.0
  %95 = vmatprep.subr.mxu0 0.0
  %96 = vmatpush1.msra.mxu0 0.0
  %97 = vmatprep.subr.mxu0 0.0
  %98 = vmatpush1.msra.mxu0 0.0
  %99 = vmatprep.subr.mxu0 0.0
  %100 = vmatpush1.msra.mxu0 0.0
  %101 = vmatprep.subr.mxu0 0.0
  %102 = vmatpush1.msra.mxu0 0.0
  %103 = vmatprep.subr.mxu0 0.0
  %104 = vmatpush1.msra.mxu0 0.0
  %105 = vmatprep.subr.mxu0 0.0
  %106 = vmatpush1.msra.mxu0 0.0
  %107 = vmatprep.subr.mxu0 0.0
  %108 = vmatpush1.msra.mxu0 0.0
  %109 = vmatprep.subr.mxu0 0.0
  %110 = vmatpush1.msra.mxu0 0.0
  %111 = vmatprep.mubr.f32.mxu0 0.0
  %112 = vmatmul.mubr.f32.gmra.mrb[0].mxu0 %v45
  %v113 = vpop.f32.mrb[0].mxu0
  %v114 = vadd.f32 %v36, %v113
  %v115 = vpop.f32.mrb[0].mxu0
  %v116 = vadd.f32 %v40, %v115
  %117 = vdwg.mxu0
  %v118 = vmax.f32 %v114, 0.0
  %v119 = vmax.f32 %v116, 0.0
  %v120 = vld [vmem:[%s3] sm:$0xff]
  %v121 = vld [vmem:[%s3 + $0x8] sm:$0xff]
  %v122 = vld [vmem:[%s3 + $0x10] sm:$0xff]
  %v123 = vld [vmem:[%s3 + $0x18] sm:$0xff]
  %v124 = vld [vmem:[%s3 + $0x20] sm:$0xff]
  %v125 = vld [vmem:[%s3 + $0x28] sm:$0xff]
  %v126 = vld [vmem:[%s3 + $0x30] sm:$0xff]
  %v127 = vld [vmem:[%s3 + $0x38] sm:$0xff]
  %v128 = vld [vmem:[%s3 + $0x40] sm:$0xff]
  %v129 = vld [vmem:[%s3 + $0x48] sm:$0xff]
  %v130 = vld [vmem:[%s3 + $0x50] sm:$0xff]
  %v131 = vld [vmem:[%s3 + $0x58] sm:$0xff]
  %v132 = vld [vmem:[%s3 + $0x60] sm:$0xff]
  %v133 = vld [vmem:[%s3 + $0x68] sm:$0xff]
  %v134 = vld [vmem:[%s3 + $0x70] sm:$0xff]
  %v135 = vld [vmem:[%s3 + $0x78] sm:$0xff]
  %v136 = vld [vmem:[%s3 + $0x80] sm:$0xff]
  %v137 = vld [vmem:[%s3 + $0x88] sm:$0xff]
  %v138 = vld [vmem:[%s3 + $0x90] sm:$0xff]
  %v139 = vld [vmem:[%s3 + $0x98] sm:$0xff]
  %v140 = vld [vmem:[%s3 + $0xa0] sm:$0xff]
  %v141 = vld [vmem:[%s3 + $0xa8] sm:$0xff]
  %v142 = vld [vmem:[%s3 + $0xb0] sm:$0xff]
  %v143 = vld [vmem:[%s3 + $0xb8] sm:$0xff]
  %v144 = vld [vmem:[%s3 + $0xc0] sm:$0xff]
  %v145 = vld [vmem:[%s3 + $0xc8] sm:$0xff]
  %v146 = vld [vmem:[%s3 + $0xd0] sm:$0xff]
  %v147 = vld [vmem:[%s3 + $0xd8] sm:$0xff]
  %v148 = vld [vmem:[%s3 + $0xe0] sm:$0xff]
  %v149 = vld [vmem:[%s3 + $0xe8] sm:$0xff]
  %v150 = vld [vmem:[%s3 + $0xf0] sm:$0xff]
  %v151 = vld [vmem:[%s3 + $0xf8] sm:$0xff]
  %v152 = vld [vmem:[%s3 + $0x100] sm:$0xff]
  %v153 = vld [vmem:[%s3 + $0x108] sm:$0xff]
  %v154 = vld [vmem:[%s3 + $0x110] sm:$0xff]
  %v155 = vld [vmem:[%s3 + $0x118] sm:$0xff]
  %v156 = vld [vmem:[%s3 + $0x120] sm:$0xff]
  %v157 = vld [vmem:[%s3 + $0x128] sm:$0xff]
  %v158 = vld [vmem:[%s3 + $0x130] sm:$0xff]
  %v159 = vld [vmem:[%s3 + $0x138] sm:$0xff]
  %v160 = vld [vmem:[%s3 + $0x140] sm:$0xff]
  %v161 = vld [vmem:[%s3 + $0x148] sm:$0xff]
  %v162 = vld [vmem:[%s3 + $0x150] sm:$0xff]
  %v163 = vld [vmem:[%s3 + $0x158] sm:$0xff]
  %v164 = vld [vmem:[%s3 + $0x160] sm:$0xff]
  %v165 = vld [vmem:[%s3 + $0x168] sm:$0xff]
  %v166 = vld [vmem:[%s3 + $0x170] sm:$0xff]
  %v167 = vld [vmem:[%s3 + $0x178] sm:$0xff]
  %v168 = vld [vmem:[%s3 + $0x180] sm:$0xff]
  %v169 = vld [vmem:[%s3 + $0x188] sm:$0xff]
  %v170 = vld [vmem:[%s3 + $0x190] sm:$0xff]
  %v171 = vld [vmem:[%s3 + $0x198] sm:$0xff]
  %v172 = vld [vmem:[%s3 + $0x1a0] sm:$0xff]
  %v173 = vld [vmem:[%s3 + $0x1a8] sm:$0xff]
  %v174 = vld [vmem:[%s3 + $0x1b0] sm:$0xff]
  %v175 = vld [vmem:[%s3 + $0x1b8] sm:$0xff]
  %v176 = vld [vmem:[%s3 + $0x1c0] sm:$0xff]
  %v177 = vld [vmem:[%s3 + $0x1c8] sm:$0xff]
  %v178 = vld [vmem:[%s3 + $0x1d0] sm:$0xff]
  %v179 = vld [vmem:[%s3 + $0x1d8] sm:$0xff]
  %v180 = vld [vmem:[%s3 + $0x1e0] sm:$0xff]
  %v181 = vld [vmem:[%s3 + $0x1e8] sm:$0xff]
  %v182 = vld [vmem:[%s3 + $0x1f0] sm:$0xff]
  %v183 = vld [vmem:[%s3 + $0x1f8] sm:$0xff]
  %v184 = vld [vmem:[%s4] sm:$0x3]
  %v186 = vlaneseq
  %v187 = vshrl.u32 %v186, 7
  %v188 = vsub.s32 0, %v187
  %v189 = vrot.slane %v184, %v188
  %v190 = vlaneseq
  %v191 = vshrl.u32 %v190, 7
  %v192 = vsub.s32 1, %v191
  %v193 = vrot.slane %v184, %v192
  %196 = vmatprep.subr.mxu0 %v121
  %197 = vmatpush1.msra.mxu0 %v120
  %198 = vmatprep.subr.mxu0 %v123
  %199 = vmatpush1.msra.mxu0 %v122
  %200 = vmatprep.subr.mxu0 %v125
  %201 = vmatpush1.msra.mxu0 %v124
  %202 = vmatprep.subr.mxu0 %v127
  %203 = vmatpush1.msra.mxu0 %v126
  %204 = vmatprep.subr.mxu0 %v129
  %205 = vmatpush1.msra.mxu0 %v128
  %206 = vmatprep.subr.mxu0 %v131
  %207 = vmatpush1.msra.mxu0 %v130
  %208 = vmatprep.subr.mxu0 %v133
  %209 = vmatpush1.msra.mxu0 %v132
  %210 = vmatprep.subr.mxu0 %v135
  %211 = vmatpush1.msra.mxu0 %v134
  %212 = vmatprep.subr.mxu0 %v137
  %213 = vmatpush1.msra.mxu0 %v136
  %214 = vmatprep.subr.mxu0 %v139
  %215 = vmatpush1.msra.mxu0 %v138
  %216 = vmatprep.subr.mxu0 %v141
  %217 = vmatpush1.msra.mxu0 %v140
  %218 = vmatprep.subr.mxu0 %v143
  %219 = vmatpush1.msra.mxu0 %v142
  %220 = vmatprep.subr.mxu0 %v145
  %221 = vmatpush1.msra.mxu0 %v144
  %222 = vmatprep.subr.mxu0 %v147
  %223 = vmatpush1.msra.mxu0 %v146
  %224 = vmatprep.subr.mxu0 %v149
  %225 = vmatpush1.msra.mxu0 %v148
  %226 = vmatprep.subr.mxu0 %v151
  %227 = vmatpush1.msra.mxu0 %v150
  %228 = vmatprep.subr.mxu0 %v153
  %229 = vmatpush1.msra.mxu0 %v152
  %230 = vmatprep.subr.mxu0 %v155
  %231 = vmatpush1.msra.mxu0 %v154
  %232 = vmatprep.subr.mxu0 %v157
  %233 = vmatpush1.msra.mxu0 %v156
  %234 = vmatprep.subr.mxu0 %v159
  %235 = vmatpush1.msra.mxu0 %v158
  %236 = vmatprep.subr.mxu0 %v161
  %237 = vmatpush1.msra.mxu0 %v160
  %238 = vmatprep.subr.mxu0 %v163
  %239 = vmatpush1.msra.mxu0 %v162
  %240 = vmatprep.subr.mxu0 %v165
  %241 = vmatpush1.msra.mxu0 %v164
  %242 = vmatprep.subr.mxu0 %v167
  %243 = vmatpush1.msra.mxu0 %v166
  %244 = vmatprep.subr.mxu0 %v169
  %245 = vmatpush1.msra.mxu0 %v168
  %246 = vmatprep.subr.mxu0 %v171
  %247 = vmatpush1.msra.mxu0 %v170
  %248 = vmatprep.subr.mxu0 %v173
  %249 = vmatpush1.msra.mxu0 %v172
  %250 = vmatprep.subr.mxu0 %v175
  %251 = vmatpush1.msra.mxu0 %v174
  %252 = vmatprep.subr.mxu0 %v177
  %253 = vmatpush1.msra.mxu0 %v176
  %254 = vmatprep.subr.mxu0 %v179
  %255 = vmatpush1.msra.mxu0 %v178
  %256 = vmatprep.subr.mxu0 %v181
  %257 = vmatpush1.msra.mxu0 %v180
  %258 = vmatprep.subr.mxu0 %v183
  %259 = vmatpush1.msra.mxu0 %v182
  %260 = vmatprep.mubr.f32.mxu0 %v119
  %261 = vmatmul.mubr.f32.gmra.mrb[0].mxu0 %v118
  %v262 = vpop.f32.mrb[0].mxu0
  %v263 = vadd.f32 %v189, %v262
  %v264 = vpop.f32.mrb[0].mxu0
  %v265 = vadd.f32 %v193, %v264
  %266 = vdwg.mxu0
  %v267 = vmax.f32 %v263, 0.0
  %v268 = vmax.f32 %v265, 0.0
  %v269 = vld [vmem:[%s5] sm:$0xff]
  %v270 = vld [vmem:[%s5 + $0x8] sm:$0xff]
  %v271 = vld [vmem:[%s5 + $0x10] sm:$0xff]
  %v272 = vld [vmem:[%s5 + $0x18] sm:$0xff]
  %v273 = vld [vmem:[%s5 + $0x20] sm:$0xff]
  %v274 = vld [vmem:[%s5 + $0x28] sm:$0xff]
  %v275 = vld [vmem:[%s5 + $0x30] sm:$0xff]
  %v276 = vld [vmem:[%s5 + $0x38] sm:$0xff]
  %v277 = vld [vmem:[%s5 + $0x40] sm:$0xff]
  %v278 = vld [vmem:[%s5 + $0x48] sm:$0xff]
  %v279 = vld [vmem:[%s5 + $0x50] sm:$0xff]
  %v280 = vld [vmem:[%s5 + $0x58] sm:$0xff]
  %v281 = vld [vmem:[%s5 + $0x60] sm:$0xff]
  %v282 = vld [vmem:[%s5 + $0x68] sm:$0xff]
  %v283 = vld [vmem:[%s5 + $0x70] sm:$0xff]
  %v284 = vld [vmem:[%s5 + $0x78] sm:$0xff]
  %v285 = vld [vmem:[%s5 + $0x80] sm:$0xff]
  %v286 = vld [vmem:[%s5 + $0x88] sm:$0xff]
  %v287 = vld [vmem:[%s5 + $0x90] sm:$0xff]
  %v288 = vld [vmem:[%s5 + $0x98] sm:$0xff]
  %v289 = vld [vmem:[%s5 + $0xa0] sm:$0xff]
  %v290 = vld [vmem:[%s5 + $0xa8] sm:$0xff]
  %v291 = vld [vmem:[%s5 + $0xb0] sm:$0xff]
  %v292 = vld [vmem:[%s5 + $0xb8] sm:$0xff]
  %v293 = vld [vmem:[%s5 + $0xc0] sm:$0xff]
  %v294 = vld [vmem:[%s5 + $0xc8] sm:$0xff]
  %v295 = vld [vmem:[%s5 + $0xd0] sm:$0xff]
  %v296 = vld [vmem:[%s5 + $0xd8] sm:$0xff]
  %v297 = vld [vmem:[%s5 + $0xe0] sm:$0xff]
  %v298 = vld [vmem:[%s5 + $0xe8] sm:$0xff]
  %v299 = vld [vmem:[%s5 + $0xf0] sm:$0xff]
  %v300 = vld [vmem:[%s5 + $0xf8] sm:$0xff]
  %v301 = vld [vmem:[%s6] sm:$0x1]
  %v303 = vlaneseq
  %v304 = vshrl.u32 %v303, 7
  %v305 = vsub.s32 0, %v304
  %v306 = vrot.slane %v301, %v305
  %308 = vmatprep.subr.mxu0 0.0
  %309 = vmatpush1.msra.mxu0 %v269
  %310 = vmatprep.subr.mxu0 0.0
  %311 = vmatpush1.msra.mxu0 %v270
  %312 = vmatprep.subr.mxu0 0.0
  %313 = vmatpush1.msra.mxu0 %v271
  %314 = vmatprep.subr.mxu0 0.0
  %315 = vmatpush1.msra.mxu0 %v272
  %316 = vmatprep.subr.mxu0 0.0
  %317 = vmatpush1.msra.mxu0 %v273
  %318 = vmatprep.subr.mxu0 0.0
  %319 = vmatpush1.msra.mxu0 %v274
  %320 = vmatprep.subr.mxu0 0.0
  %321 = vmatpush1.msra.mxu0 %v275
  %322 = vmatprep.subr.mxu0 0.0
  %323 = vmatpush1.msra.mxu0 %v276
  %324 = vmatprep.subr.mxu0 0.0
  %325 = vmatpush1.msra.mxu0 %v277
  %326 = vmatprep.subr.mxu0 0.0
  %327 = vmatpush1.msra.mxu0 %v278
  %328 = vmatprep.subr.mxu0 0.0
  %329 = vmatpush1.msra.mxu0 %v279
  %330 = vmatprep.subr.mxu0 0.0
  %331 = vmatpush1.msra.mxu0 %v280
  %332 = vmatprep.subr.mxu0 0.0
  %333 = vmatpush1.msra.mxu0 %v281
  %334 = vmatprep.subr.mxu0 0.0
  %335 = vmatpush1.msra.mxu0 %v282
  %336 = vmatprep.subr.mxu0 0.0
  %337 = vmatpush1.msra.mxu0 %v283
  %338 = vmatprep.subr.mxu0 0.0
  %339 = vmatpush1.msra.mxu0 %v284
  %340 = vmatprep.subr.mxu0 0.0
  %341 = vmatpush1.msra.mxu0 %v285
  %342 = vmatprep.subr.mxu0 0.0
  %343 = vmatpush1.msra.mxu0 %v286
  %344 = vmatprep.subr.mxu0 0.0
  %345 = vmatpush1.msra.mxu0 %v287
  %346 = vmatprep.subr.mxu0 0.0
  %347 = vmatpush1.msra.mxu0 %v288
  %348 = vmatprep.subr.mxu0 0.0
  %349 = vmatpush1.msra.mxu0 %v289
  %350 = vmatprep.subr.mxu0 0.0
  %351 = vmatpush1.msra.mxu0 %v290
  %352 = vmatprep.subr.mxu0 0.0
  %353 = vmatpush1.msra.mxu0 %v291
  %354 = vmatprep.subr.mxu0 0.0
  %355 = vmatpush1.msra.mxu0 %v292
  %356 = vmatprep.subr.mxu0 0.0
  %357 = vmatpush1.msra.mxu0 %v293
  %358 = vmatprep.subr.mxu0 0.0
  %359 = vmatpush1.msra.mxu0 %v294
  %360 = vmatprep.subr.mxu0 0.0
  %361 = vmatpush1.msra.mxu0 %v295
  %362 = vmatprep.subr.mxu0 0.0
  %363 = vmatpush1.msra.mxu0 %v296
  %364 = vmatprep.subr.mxu0 0.0
  %365 = vmatpush1.msra.mxu0 %v297
  %366 = vmatprep.subr.mxu0 0.0
  %367 = vmatpush1.msra.mxu0 %v298
  %368 = vmatprep.subr.mxu0 0.0
  %369 = vmatpush1.msra.mxu0 %v299
  %370 = vmatprep.subr.mxu0 0.0
  %371 = vmatpush1.msra.mxu0 %v300
  %372 = vmatprep.mubr.f32.mxu0 %v268
  %373 = vmatmul.mubr.f32.gmra.mrb[0].mxu0 %v267
  %v374 = vpop.f32.mrb[0].mxu0
  %v375 = vadd.f32 %v306, %v374
  %v376 = vpop.f32.mrb[0].mxu0
  %377 = vdwg.mxu0
  %v378 = vtanh.pop %v375
  %v379 = vmul.f32 %v378, 2.0
  %380 = vst [vmem:[%s7] sm:$0xff] %v379
  // Predicated region
  $region30: #{actor_forward.1} parent=0 // pred_check
    _
  $region31: #{actor_forward.1} parent=0 // pred_check_branch
    %382 = sbr.rel (0) target = $region33
  $region32: #{actor_forward.1} parent=0 // pred_region
    _
  $region33: #{actor_forward.1} parent=0 // pred_fallthru
    _
  // Predicated region
  $region34: #{actor_forward.1} parent=0 // pred_check
    _
  $region35: #{actor_forward.1} parent=0 // pred_check_branch
    %384 = sbr.rel (0) target = $region37
  $region36: #{actor_forward.1} parent=0 // pred_region
    _
  $region37: #{actor_forward.1} parent=0 // pred_fallthru
    _

</llo_original>
